<compile_context>
chip_gen: v7x
topology: tpu7x:2x2x1
jax: 0.10.0
libtpu: 0.0.40
codegen_flags: <defaults>
</compile_context>

<pallas_src>
import jax
import jax.numpy as jnp
from jax.experimental import pallas as pl
from jax.experimental.pallas import tpu as pltpu


_LANES = 128
_TARGET_BLOCK_BYTES = 8 * 1024 * 1024   # ~8 MiB tiles amortize the ~0.35 us/step cost
                                        # to <10% even at v7x's 3.2 TB/s HBM.
_MIN_SPLIT_BYTES = 4 * 1024 * 1024      # below this: a single block (no forced splitting);
                                        # above: even >=2 steps so both v7x TCs drive DMA.
_VMEM_LIMIT_BYTES = 48 * 1024 * 1024    # 2 arrays x 2 bufs x 8 MiB = 32 MiB + headroom,
                                        # still under v7x's 64 MiB physical VMEM per TC.


def _copy_kernel(x_ref, o_ref):
    # identity copy of the current (block_rows, 128) tile
    o_ref[...] = x_ref[...]


def _dma_copy_kernel(x_hbm, o_hbm, sem):
    # Whole-array HBM->HBM DMA: no VMEM staging, no per-block overhead,
    # handles arbitrary (non-multiple-of-128) element counts.
    cp = pltpu.make_async_copy(x_hbm, o_hbm, sem)
    cp.start()
    cp.wait()


def _cdiv(a, b):
    return -(-a // b)


def _sublane_multiple(dtype):
    # dtype-aware second-minor granularity: 8 for 32-bit, 16 for 16-bit, 32 for 8-bit
    itemsize = jnp.dtype(dtype).itemsize
    return {1: 32, 2: 16}.get(itemsize, 8)


def _choose_block_rows(rows, dtype):
    itemsize = jnp.dtype(dtype).itemsize
    sub = _sublane_multiple(dtype)
    row_bytes = _LANES * itemsize
    total_bytes = rows * row_bytes

    if total_bytes <= _MIN_SPLIT_BYTES:
        # Small tensor: one full-extent block (grid of 1 step) -- no forced splitting,
        # no per-step pipeline overhead.  Full-extent blocks need no (8,128) rounding.
        return rows

    # Bandwidth-bound tensor: cap blocks at ~8 MiB and make the step count even
    # (>= 2) so a v7x megacore can split the "parallel" grid across both TCs.
    max_block_rows = max(sub, (_TARGET_BLOCK_BYTES // row_bytes) // sub * sub)
    nsteps = max(2, _cdiv(rows, max_block_rows))
    if nsteps % 2:
        nsteps += 1
    block_rows = max(sub, _cdiv(_cdiv(rows, nsteps), sub) * sub)
    return min(block_rows, rows)


def _pallas_copy_2d(x2d):
    """Copy a (rows, 128) slab through VMEM with a tiled Pallas identity kernel."""
    rows, cols = x2d.shape
    block_rows = _choose_block_rows(rows, x2d.dtype)
    grid = (_cdiv(rows, block_rows),)   # partial last block handled by Pallas clipping
    return pl.pallas_call(
        _copy_kernel,
        out_shape=jax.ShapeDtypeStruct((rows, cols), x2d.dtype),
        grid_spec=pltpu.PrefetchScalarGridSpec(
            num_scalar_prefetch=0,
            grid=grid,
            in_specs=[pl.BlockSpec((block_rows, cols), lambda i: (i, 0))],
            out_specs=pl.BlockSpec((block_rows, cols), lambda i: (i, 0)),
        ),
        compiler_params=pltpu.CompilerParams(
            dimension_semantics=("parallel",),
            vmem_limit_bytes=_VMEM_LIMIT_BYTES,
        ),
    )(x2d)


def _pallas_copy_flat_dma(flat):
    """Ragged-size copy: one HBM->HBM DMA over the flat array (no glue, no concat)."""
    (n,) = flat.shape
    return pl.pallas_call(
        _dma_copy_kernel,
        out_shape=jax.ShapeDtypeStruct((n,), flat.dtype),
        in_specs=[pl.BlockSpec(memory_space=pl.ANY)],
        out_specs=pl.BlockSpec(memory_space=pl.ANY),
        scratch_shapes=[pltpu.SemaphoreType.DMA],
    )(flat)


class View:
    """Pallas-backed equivalent of the PyTorch `View` module.

    forward(tensor) == tensor.view(self.size)  (row-major element order)

    materialize=False returns a metadata-only reshape (the true zero-cost
    equivalent of torch.view, which is an alias); materialize=True routes the
    bytes through a Pallas copy kernel.
    """

    def __init__(self, size, materialize=True):
        self.size = tuple(size) if isinstance(size, (tuple, list)) else (size,)
        self.materialize = materialize

    def _resolve_size(self, total):
        # Resolve a single -1, mirroring torch.view semantics, with a proper
        # divisibility check instead of silently floor-dividing.
        size = list(self.size)
        if size.count(-1) > 1:
            raise ValueError("only one dimension can be inferred (-1)")
        if -1 in size:
            known = 1
            for s in size:
                if s != -1:
                    known *= s
            if known == 0 or total % known != 0:
                raise ValueError(
                    f"cannot view tensor of {total} elements as {tuple(self.size)}")
            size[size.index(-1)] = total // known
        else:
            prod = 1
            for s in size:
                prod *= s
            if prod != total:
                raise ValueError(
                    f"cannot view tensor of {total} elements as {tuple(self.size)}")
        return tuple(size)

    def __call__(self, tensor):
        total = tensor.size
        size = self._resolve_size(total)

        # TODO(synk): torch.view is a zero-copy alias; a Pallas kernel necessarily
        # materializes a copy.  materialize=False gives the zero-cost path.
        if not self.materialize:
            return tensor.reshape(size)     # metadata-only, no kernel

        flat = tensor.reshape(-1)           # glue: metadata-only flatten
        n = flat.shape[0]
        if n == 0:
            return flat.reshape(size)

        if n % _LANES == 0:
            rows = n // _LANES
            out_flat = _pallas_copy_2d(flat.reshape(rows, _LANES)).reshape(-1)
        else:
            # Ragged: single HBM->HBM DMA of the whole flat array (read n + write n,
            # no concatenate / no extra full-tensor pass).
            out_flat = _pallas_copy_flat_dma(flat)

        return out_flat.reshape(size)       # glue: metadata-only reshape


if __name__ == "__main__":
    key = jax.random.PRNGKey(0)
    k1, k2, k3, k4 = jax.random.split(key, 4)

    # Small NCHW-like input consistent with typical use of View in conv nets.
    x = jax.random.normal(k1, (2, 4, 16, 16), dtype=jnp.float32)

    # View(size=(2, -1)): flatten all but batch, like a classic pre-FC reshape.
    view = View(size=(2, -1))
    y = jax.block_until_ready(view(x))
    assert y.shape == (2, 4 * 16 * 16), y.shape
    assert y.dtype == x.dtype
    assert bool(jnp.array_equal(y, x.reshape(2, -1)))

    # Explicit full target shape.
    y2 = jax.block_until_ready(View(size=(2, 4, 256))(x))
    assert y2.shape == (2, 4, 256)
    assert bool(jnp.array_equal(y2, x.reshape(2, 4, 256)))

    # bf16 path (exercises dtype-aware 16-row sublane granularity).
    xb = jax.random.normal(k2, (2, 16, 128), dtype=jnp.bfloat16)
    yb = jax.block_until_ready(View(size=(2, -1))(xb))
    assert yb.shape == (2, 16 * 128) and yb.dtype == jnp.bfloat16
    assert bool(jnp.array_equal(yb, xb.reshape(2, -1)))

    # Ragged total (130 elements, not a multiple of 128): HBM->HBM DMA path.
    xr = jax.random.normal(k3, (2, 5, 13), dtype=jnp.float32)
    yr = jax.block_until_ready(View(size=(-1,))(xr))
    assert yr.shape == (130,)
    assert bool(jnp.array_equal(yr, xr.reshape(-1)))

    # Bandwidth-bound-ish size (~5.4 MiB f32): even 2-step grid + partial last block.
    xl = jax.random.normal(k4, (10563, 128), dtype=jnp.float32)
    yl = jax.block_until_ready(View(size=(-1,))(xl))
    assert yl.shape == (10563 * 128,)
    assert bool(jnp.array_equal(yl, xl.reshape(-1)))

    # Metadata-only fast path (no kernel): true torch.view equivalent.
    ym = jax.block_until_ready(View(size=(2, -1), materialize=False)(x))
    assert bool(jnp.array_equal(ym, x.reshape(2, -1)))

    print("KERNEL_OK")
</pallas_src>

<mosaic_0001>
module attributes {stable_mosaic.version = 11 : i64} {
  func.func @_copy_kernel(%arg0: i32, %arg1: memref<16x128xf32, #tpu.memory_space<vmem>>, %arg2: memref<16x128xf32, #tpu.memory_space<vmem>>) attributes {dimension_semantics = [#tpu.dimension_semantics<parallel>], iteration_bounds = array<i64: 1>, scalar_prefetch = 0 : i64, scratch_operands = 0 : i64, tpu.core_type = #tpu.core_type<tc>, window_params = [{transform_indices = @transform_0, window_bounds = array<i64: 16, 128>}, {transform_indices = @transform_1, window_bounds = array<i64: 16, 128>}]} {
    %c0 = arith.constant 0 : index
    %c0_0 = arith.constant 0 : index
    %0 = vector.load %arg1[%c0, %c0_0] : memref<16x128xf32, #tpu.memory_space<vmem>>, vector<16x128xf32>
    %c0_1 = arith.constant 0 : index
    %c0_2 = arith.constant 0 : index
    %1 = vector.load %arg2[%c0_1, %c0_2] : memref<16x128xf32, #tpu.memory_space<vmem>>, vector<16x128xf32>
    tpu.vector_store %arg2[%c0_1, %c0_2], %0 {strides = array<i32>} : memref<16x128xf32, #tpu.memory_space<vmem>>, vector<16x128xf32>,
    return
  }
  func.func @transform_0(%arg0: i32) -> (i32, i32) {
    %c0_i32 = arith.constant 0 : i32
    %c0_i32_0 = arith.constant 0 : i32
    return %arg0, %c0_i32 : i32, i32
  }
  func.func @transform_1(%arg0: i32) -> (i32, i32) {
    %c0_i32 = arith.constant 0 : i32
    %c0_i32_0 = arith.constant 0 : i32
    return %arg0, %c0_i32 : i32, i32
  }
}

</mosaic_0001>

<llo_original>
// kernel: tpu_custom_call.1
$region0: #{tpu_custom_call.1}
  #allocation0 [shape = 'u32[]', space=smem, size = 0x4, offset = 0x4, fixed_abs, tag = 'smem constant byte address 0x4 - core index']
  #allocation1 [shape = 'u32[144,128]{1,0:T(1,128)}', space=vmem, size = 0x12000, scoped, tag = 'internal scratch']
  %s0 = inlined_call_operand.hbm [shape: f32[16,128], index: 0, kind: input, shape index: {}]
  %s1 = inlined_call_operand.hbm [shape: f32[16,128], index: 1, kind: output, shape index: {}]
  %s2 = sld [smem:[#allocation0]]
  $region18: #{tpu_custom_call.1} parent=0
    _
  %s4 = ssub.s32 1, %s2
  %s5 = scalar_select 0, %s4, %s2
  $region1: #{tpu_custom_call.1} parent=0
    #allocation2 [shape = 'u8[8192]{0}', space=vmem, size = 0x2000, scoped, tag = 'input window, operand 0, single buffered']
    #allocation3 [shape = 's32[1]{0}', space=sflag, size = 0x4, scoped, tag = 'scoped memory for tpu_custom_call.1']
    #allocation4 [shape = 's32[1]{0}', space=sflag, size = 0x4, scoped, tag = 'scoped memory for tpu_custom_call.1']
    #allocation5 [shape = 'u8[8192]{0}', space=vmem, size = 0x2000, scoped, tag = 'output window, operand 0, single buffered']
    %6 = vsyncpa [#allocation3], 0
    %7 = vsyncpa [#allocation4], 0
    // Predicated region
    $region2: #{tpu_custom_call.1} parent=1 // pred_check
      _
    $region3: #{tpu_custom_call.1} parent=1 // pred_check_branch
      %9 = sbr.rel (0) target = $region5
    $region4: #{tpu_custom_call.1} parent=1 // pred_region
      %s11 = ssub.s32 256, 256
      %12 = vsyncadd [#allocation3], %s11
      %s13 = sshll.u32 [#allocation2], 4
      %s14 = int_to_ptr.vmem [resolvable:$true] %s13
      %19 = dma.hbm_to_vmem [thread:$0]  %s0, 256, %s14, [#allocation3], 128, 128, 8
    $region5: #{tpu_custom_call.1} parent=1 // pred_fallthru
      _
    // Predicated region
    $region6: #{tpu_custom_call.1} parent=1 // pred_check
      _
    $region7: #{tpu_custom_call.1} parent=1 // pred_check_branch
      %21 = sbr.rel (0) target = $region9
    $region8: #{tpu_custom_call.1} parent=1 // pred_region
      %22 = dma.done [#allocation3], 256
    $region9: #{tpu_custom_call.1} parent=1 // pred_fallthru
      _
    %v23 = vld [vmem:[#allocation2] sm:$0xff]
    %v24 = vld [vmem:[#allocation2 + $0x8] sm:$0xff]
    %25 = vst [vmem:[#allocation5] sm:$0xff] %v23
    %26 = vst [vmem:[#allocation5 + $0x8] sm:$0xff] %v24
    // Predicated region
    $region10: #{tpu_custom_call.1} parent=1 // pred_check
      _
    $region11: #{tpu_custom_call.1} parent=1 // pred_check_branch
      %28 = sbr.rel (0) target = $region13
    $region12: #{tpu_custom_call.1} parent=1 // pred_region
      %s30 = ssub.s32 256, 256
      %31 = vsyncadd [#allocation4], %s30
      %s32 = sshll.u32 [#allocation5], 4
      %s33 = int_to_ptr.vmem [resolvable:$true] %s32
      %38 = dma.vmem_to_hbm [thread:$0]  %s33, 256, %s1, [#allocation4], 128, 128, 8
    $region13: #{tpu_custom_call.1} parent=1 // pred_fallthru
      _
    // Predicated region
    $region14: #{tpu_custom_call.1} parent=1 // pred_check
      _
    $region15: #{tpu_custom_call.1} parent=1 // pred_check_branch
      %40 = sbr.rel (0) target = $region17
    $region16: #{tpu_custom_call.1} parent=1 // pred_region
      %41 = dma.done [#allocation4], 256
    $region17: #{tpu_custom_call.1} parent=1 // pred_fallthru
      _
    %42 = vsyncpa [#allocation3], 1
    %43 = vsyncpa [#allocation4], 1

</llo_original>
